<compile_context>
chip_gen: v7x
topology: tpu7x:2x2x1
jax: 0.10.0
libtpu: 0.0.40
codegen_flags: <defaults>
</compile_context>

<pallas_src>
import functools

import jax
import jax.numpy as jnp
from jax.experimental import pallas as pl
from jax.experimental.pallas import tpu as pltpu

ALPHA = 1.0   # module default alpha=1
GAMMA = 2     # module default gamma=2 (integer power -> lowered as a multiply)
EPS = 1e-8
_LANES = 128
_SUBLANES = 8


def _focal_kernel(t_ref, x_ref, o_ref, *, n, block_rows, needs_mask):
    t = t_ref[...].astype(jnp.float32)
    x = x_ref[...].astype(jnp.float32)

    s = jax.nn.sigmoid(x)                       # EUP: exp + reciprocal
    pt = t * s + (1.0 - t) * (1.0 - s)
    # exact-equality select, matching torch.where(targets == 1, alpha, 1-alpha+eps)
    alpha = jnp.where(t == 1.0,
                      jnp.float32(ALPHA),
                      jnp.float32(1.0 - ALPHA + EPS))
    one_minus_pt = 1.0 - pt
    f_loss = -alpha * (one_minus_pt ** GAMMA) * jnp.log(pt + EPS)   # EUP: log

    if needs_mask:
        # Zero out elements beyond the valid count n (covers both the wrapper
        # lane-padding and any partial edge block in the rows dimension).
        # Garbage (even NaN/Inf) in the padded region is replaced by 0 here.
        i = pl.program_id(0)
        row_ids = jax.lax.broadcasted_iota(jnp.int32, (block_rows, _LANES), 0)
        lane_ids = jax.lax.broadcasted_iota(jnp.int32, (block_rows, _LANES), 1)
        gidx = (i * block_rows + row_ids) * _LANES + lane_ids
        f_loss = jnp.where(gidx < n, f_loss, jnp.float32(0.0))

    # Fold block_rows -> 8 sublanes with elementwise (VPU) adds only; the
    # reshape is tile-preserving (each (8,128) minor tile stays intact), so no
    # cross-lane/sublane (XLU) traffic on the steady-state path.
    partial = f_loss.reshape(block_rows // _SUBLANES, _SUBLANES, _LANES).sum(axis=0)
    o_ref[...] = partial


def focal_loss(targets, inputs, block_rows=1024):
    """sum(-alpha * (1-pt)^gamma * log(pt + eps)), matching the torch module."""
    assert targets.shape == inputs.shape
    n = int(targets.size)
    if n == 0:
        return jnp.float32(0.0)

    # Keep the original dtype for the HBM->VMEM DMA; cast happens in-kernel.
    t_flat = jnp.ravel(targets)
    x_flat = jnp.ravel(inputs)

    rows = pl.cdiv(n, _LANES)
    rows = ((rows + _SUBLANES - 1) // _SUBLANES) * _SUBLANES
    pad = rows * _LANES - n
    if pad:
        # Fallback copy only when n isn't a multiple of 8*128; the padded tail
        # is masked to an exactly-zero contribution inside the kernel.
        t_flat = jnp.pad(t_flat, (0, pad))
        x_flat = jnp.pad(x_flat, (0, pad))

    t2 = t_flat.reshape(rows, _LANES)
    x2 = x_flat.reshape(rows, _LANES)

    block_rows = max(_SUBLANES, (block_rows // _SUBLANES) * _SUBLANES)
    block_rows = min(block_rows, rows)
    grid = pl.cdiv(rows, block_rows)
    needs_mask = (grid * block_rows * _LANES) != n

    kernel = functools.partial(_focal_kernel, n=n, block_rows=block_rows,
                               needs_mask=needs_mask)

    partials = pl.pallas_call(
        kernel,
        out_shape=jax.ShapeDtypeStruct((grid * _SUBLANES, _LANES), jnp.float32),
        grid_spec=pltpu.PrefetchScalarGridSpec(
            num_scalar_prefetch=0,
            grid=(grid,),
            in_specs=[
                pl.BlockSpec((block_rows, _LANES), lambda i: (i, 0)),
                pl.BlockSpec((block_rows, _LANES), lambda i: (i, 0)),
            ],
            out_specs=pl.BlockSpec((_SUBLANES, _LANES), lambda i: (i, 0)),
        ),
        compiler_params=pltpu.CompilerParams(
            # Each grid step owns its output tile -> no serializing accumulator;
            # lets v7x shard the grid across both TensorCores.
            dimension_semantics=("parallel",)),
    )(t2, x2)

    # Tiny final reduce (grid*8 x 128 f32) outside the kernel.
    return jnp.sum(partials)


def _focal_loss_ref(targets, inputs):
    t = targets.astype(jnp.float32)
    x = inputs.astype(jnp.float32)
    s = jax.nn.sigmoid(x)
    pt = t * s + (1.0 - t) * (1.0 - s)
    alpha = jnp.where(t == 1.0, ALPHA, 1.0 - ALPHA + EPS)
    return jnp.sum(-alpha * (1.0 - pt) ** GAMMA * jnp.log(pt + EPS))


if __name__ == "__main__":
    key = jax.random.PRNGKey(0)
    k_t, k_x = jax.random.split(key)

    B, C, H, W = 2, 4, 16, 16
    # targets are 0/1 (as focal loss expects), inputs are raw logits
    targets = jax.random.bernoulli(k_t, p=0.3, shape=(B, C, H, W)).astype(jnp.float32)
    inputs = jax.random.normal(k_x, (B, C, H, W), dtype=jnp.float32)

    loss = focal_loss(targets, inputs)
    jax.block_until_ready(loss)
    ref = _focal_loss_ref(targets, inputs)
    assert jnp.allclose(loss, ref, rtol=1e-5, atol=1e-5), (loss, ref)

    # Also exercise the non-lane-aligned path (wrapper pad + in-kernel mask).
    k_t2, k_x2 = jax.random.split(k_x)
    targets2 = jax.random.bernoulli(k_t2, p=0.5, shape=(3, 5, 7, 11)).astype(jnp.float32)
    inputs2 = jax.random.normal(k_x2, (3, 5, 7, 11), dtype=jnp.float32)
    loss2 = focal_loss(targets2, inputs2)
    jax.block_until_ready(loss2)
    ref2 = _focal_loss_ref(targets2, inputs2)
    assert jnp.allclose(loss2, ref2, rtol=1e-5, atol=1e-5), (loss2, ref2)

    print("KERNEL_OK")
</pallas_src>

<mosaic_0001>
module attributes {stable_mosaic.version = 11 : i64} {
  func.func @_focal_kernel(%arg0: i32, %arg1: memref<16x128xf32, #tpu.memory_space<vmem>>, %arg2: memref<16x128xf32, #tpu.memory_space<vmem>>, %arg3: memref<8x128xf32, #tpu.memory_space<vmem>>) attributes {dimension_semantics = [#tpu.dimension_semantics<parallel>], iteration_bounds = array<i64: 1>, scalar_prefetch = 0 : i64, scratch_operands = 0 : i64, tpu.core_type = #tpu.core_type<tc>, window_params = [{transform_indices = @transform_0, window_bounds = array<i64: 16, 128>}, {transform_indices = @transform_1, window_bounds = array<i64: 16, 128>}, {transform_indices = @transform_2, window_bounds = array<i64: 8, 128>}]} {
    %c0 = arith.constant 0 : index
    %c0_0 = arith.constant 0 : index
    %0 = vector.load %arg1[%c0, %c0_0] : memref<16x128xf32, #tpu.memory_space<vmem>>, vector<16x128xf32>
    %c0_1 = arith.constant 0 : index
    %c0_2 = arith.constant 0 : index
    %1 = vector.load %arg2[%c0_1, %c0_2] : memref<16x128xf32, #tpu.memory_space<vmem>>, vector<16x128xf32>
    %2 = arith.negf %1 : vector<16x128xf32>
    %3 = math.exp %2 : vector<16x128xf32>
    %cst = arith.constant 1.000000e+00 : f32
    %4 = vector.broadcast %cst : f32 to vector<16x128xf32>
    %5 = arith.addf %4, %3 : vector<16x128xf32>
    %6 = arith.divf %4, %5 : vector<16x128xf32>
    %7 = arith.mulf %0, %6 : vector<16x128xf32>
    %cst_3 = arith.constant 1.000000e+00 : f32
    %8 = vector.broadcast %cst_3 : f32 to vector<16x128xf32>
    %9 = arith.subf %8, %0 : vector<16x128xf32>
    %cst_4 = arith.constant 1.000000e+00 : f32
    %10 = vector.broadcast %cst_4 : f32 to vector<16x128xf32>
    %11 = arith.subf %10, %6 : vector<16x128xf32>
    %12 = arith.mulf %9, %11 : vector<16x128xf32>
    %13 = arith.addf %7, %12 : vector<16x128xf32>
    %cst_5 = arith.constant 1.000000e+00 : f32
    %14 = vector.broadcast %cst_5 : f32 to vector<16x128xf32>
    %15 = arith.cmpf oeq, %0, %14 : vector<16x128xf32>
    %cst_6 = arith.constant 1.000000e+00 : f32
    %cst_7 = arith.constant 9.99999993E-9 : f32
    %16 = vector.broadcast %cst_6 : f32 to vector<16x128xf32>
    %17 = vector.broadcast %cst_7 : f32 to vector<16x128xf32>
    %18 = arith.select %15, %16, %17 : vector<16x128xi1>, vector<16x128xf32>
    %cst_8 = arith.constant 1.000000e+00 : f32
    %19 = vector.broadcast %cst_8 : f32 to vector<16x128xf32>
    %20 = arith.subf %19, %13 : vector<16x128xf32>
    %cst_9 = arith.constant 0.000000e+00 : f32
    %21 = vector.broadcast %cst_9 : f32 to vector<16x128xf32>
    %22 = arith.subf %21, %18 : vector<16x128xf32>
    %23 = arith.mulf %20, %20 : vector<16x128xf32>
    %24 = arith.mulf %22, %23 : vector<16x128xf32>
    %cst_10 = arith.constant 9.99999993E-9 : f32
    %25 = vector.broadcast %cst_10 : f32 to vector<16x128xf32>
    %26 = arith.addf %13, %25 : vector<16x128xf32>
    %27 = math.log %26 : vector<16x128xf32>
    %28 = arith.mulf %24, %27 : vector<16x128xf32>
    %29 = vector.shape_cast %28 : vector<16x128xf32> to vector<2x8x128xf32>
    %cst_11 = arith.constant dense<0.000000e+00> : vector<8x128xf32>
    %30 = vector.multi_reduction <add>, %29, %cst_11 [0] : vector<2x8x128xf32> to vector<8x128xf32>
    %c0_12 = arith.constant 0 : index
    %c0_13 = arith.constant 0 : index
    %31 = vector.load %arg3[%c0_12, %c0_13] : memref<8x128xf32, #tpu.memory_space<vmem>>, vector<8x128xf32>
    tpu.vector_store %arg3[%c0_12, %c0_13], %30 {strides = array<i32>} : memref<8x128xf32, #tpu.memory_space<vmem>>, vector<8x128xf32>,
    return
  }
  func.func @transform_0(%arg0: i32) -> (i32, i32) {
    %c0_i32 = arith.constant 0 : i32
    %c0_i32_0 = arith.constant 0 : i32
    return %arg0, %c0_i32 : i32, i32
  }
  func.func @transform_1(%arg0: i32) -> (i32, i32) {
    %c0_i32 = arith.constant 0 : i32
    %c0_i32_0 = arith.constant 0 : i32
    return %arg0, %c0_i32 : i32, i32
  }
  func.func @transform_2(%arg0: i32) -> (i32, i32) {
    %c0_i32 = arith.constant 0 : i32
    %c0_i32_0 = arith.constant 0 : i32
    return %arg0, %c0_i32 : i32, i32
  }
}

</mosaic_0001>

<llo_original>
// kernel: tpu_custom_call.1
$region0: #{tpu_custom_call.1}
  #allocation0 [shape = 'u32[]', space=smem, size = 0x4, offset = 0x4, fixed_abs, tag = 'smem constant byte address 0x4 - core index']
  #allocation1 [shape = 'u32[144,128]{1,0:T(1,128)}', space=vmem, size = 0x12000, scoped, tag = 'internal scratch']
  %s0 = inlined_call_operand.hbm [shape: f32[16,128], index: 0, kind: input, shape index: {}]
  %s1 = inlined_call_operand.hbm [shape: f32[16,128], index: 1, kind: input, shape index: {}]
  %s2 = inlined_call_operand.hbm [shape: f32[8,128], index: 2, kind: output, shape index: {}]
  %s3 = sld [smem:[#allocation0]]
  $region26: #{tpu_custom_call.1} parent=0
    _
  %s5 = ssub.s32 1, %s3
  %s6 = scalar_select 0, %s5, %s3
  $region1: #{tpu_custom_call.1} parent=0
    #allocation2 [shape = 'u8[8192]{0}', space=vmem, size = 0x2000, scoped, tag = 'input window, operand 0, single buffered']
    #allocation3 [shape = 's32[1]{0}', space=sflag, size = 0x4, scoped, tag = 'scoped memory for tpu_custom_call.1']
    #allocation4 [shape = 's32[1]{0}', space=sflag, size = 0x4, scoped, tag = 'scoped memory for tpu_custom_call.1']
    #allocation5 [shape = 'u8[8192]{0}', space=vmem, size = 0x2000, scoped, tag = 'input window, operand 1, single buffered']
    #allocation6 [shape = 's32[1]{0}', space=sflag, size = 0x4, scoped, tag = 'scoped memory for tpu_custom_call.1']
    #allocation7 [shape = 'u8[4096]{0}', space=vmem, size = 0x1000, scoped, tag = 'output window, operand 0, single buffered']
    %7 = vsyncpa [#allocation3], 0
    %8 = vsyncpa [#allocation6], 0
    %9 = vsyncpa [#allocation4], 0
    // Predicated region
    $region2: #{tpu_custom_call.1} parent=1 // pred_check
      _
    $region3: #{tpu_custom_call.1} parent=1 // pred_check_branch
      %11 = sbr.rel (0) target = $region5
    $region4: #{tpu_custom_call.1} parent=1 // pred_region
      %s13 = ssub.s32 256, 256
      %14 = vsyncadd [#allocation3], %s13
      %s15 = sshll.u32 [#allocation2], 4
      %s16 = int_to_ptr.vmem [resolvable:$true] %s15
      %21 = dma.hbm_to_vmem [thread:$0]  %s0, 256, %s16, [#allocation3], 128, 128, 8
    $region5: #{tpu_custom_call.1} parent=1 // pred_fallthru
      _
    // Predicated region
    $region6: #{tpu_custom_call.1} parent=1 // pred_check
      _
    $region7: #{tpu_custom_call.1} parent=1 // pred_check_branch
      %23 = sbr.rel (0) target = $region9
    $region8: #{tpu_custom_call.1} parent=1 // pred_region
      %s25 = ssub.s32 256, 256
      %26 = vsyncadd [#allocation6], %s25
      %s27 = sshll.u32 [#allocation5], 4
      %s28 = int_to_ptr.vmem [resolvable:$true] %s27
      %33 = dma.hbm_to_vmem [thread:$0]  %s1, 256, %s28, [#allocation6], 128, 128, 8
    $region9: #{tpu_custom_call.1} parent=1 // pred_fallthru
      _
    // Predicated region
    $region10: #{tpu_custom_call.1} parent=1 // pred_check
      _
    $region11: #{tpu_custom_call.1} parent=1 // pred_check_branch
      %35 = sbr.rel (0) target = $region13
    $region12: #{tpu_custom_call.1} parent=1 // pred_region
      %36 = dma.done [#allocation3], 256
    $region13: #{tpu_custom_call.1} parent=1 // pred_fallthru
      _
    // Predicated region
    $region14: #{tpu_custom_call.1} parent=1 // pred_check
      _
    $region15: #{tpu_custom_call.1} parent=1 // pred_check_branch
      %38 = sbr.rel (0) target = $region17
    $region16: #{tpu_custom_call.1} parent=1 // pred_region
      %39 = dma.done [#allocation6], 256
    $region17: #{tpu_custom_call.1} parent=1 // pred_fallthru
      _
    %v40 = vld [vmem:[#allocation2] sm:$0xff]
    %v41 = vld [vmem:[#allocation2 + $0x8] sm:$0xff]
    %v42 = vld [vmem:[#allocation5] sm:$0xff]
    %v43 = vld [vmem:[#allocation5 + $0x8] sm:$0xff]
    %v44 = vxor.u32 %v42, 2147483648
    %v45 = vxor.u32 %v43, 2147483648
    %v46 = vmul.f32 %v44, 1.442695
    %v47 = vpow.pop %v46
    %v48 = vmul.f32 %v45, 1.442695
    %v49 = vpow.pop %v48
    %v50 = vadd.f32 %v47, 1.0
    %v51 = vadd.f32 %v49, 1.0
    %v52 = vrcp.pop %v50
    %v53 = vmul.f32 1.0, %v52
    %v54 = vrcp.pop %v51
    %v55 = vmul.f32 1.0, %v54
    %v56 = vmul.f32 %v40, %v53
    %v57 = vmul.f32 %v41, %v55
    %v58 = vsub.f32 1.0, %v40
    %v59 = vsub.f32 1.0, %v41
    %v60 = vsub.f32 1.0, %v53
    %v61 = vsub.f32 1.0, %v55
    %v62 = vmul.f32 %v58, %v60
    %v63 = vmul.f32 %v59, %v61
    %v64 = vadd.f32 %v56, %v62
    %v65 = vadd.f32 %v57, %v63
    %vm66 = vcmp.eq.f32.partialorder %v40, 1.0
    %vm67 = vcmp.eq.f32.partialorder %v41, 1.0
    %v68 = vsel %vm66, 1.0, 1e-08
    %v69 = vsel %vm67, 1.0, 1e-08
    %v70 = vsub.f32 1.0, %v64
    %v71 = vsub.f32 1.0, %v65
    %v72 = vsub.f32 0.0, %v68
    %v73 = vsub.f32 0.0, %v69
    %v74 = vmul.f32 %v70, %v70
    %v75 = vmul.f32 %v71, %v71
    %v76 = vmul.f32 %v72, %v74
    %v77 = vmul.f32 %v73, %v75
    %v78 = vadd.f32 %v64, 1e-08
    %v79 = vadd.f32 %v65, 1e-08
    %v80 = vlog2.pop %v78
    %v81 = vmul.f32 %v80, 0.6931472
    %v82 = vlog2.pop %v79
    %v83 = vmul.f32 %v82, 0.6931472
    %v84 = vmul.f32 %v76, %v81
    %v85 = vmul.f32 %v77, %v83
    %v86 = vadd.f32 %v84, %v85
    %87 = vst [vmem:[#allocation7] sm:$0xff] %v86
    // Predicated region
    $region18: #{tpu_custom_call.1} parent=1 // pred_check
      _
    $region19: #{tpu_custom_call.1} parent=1 // pred_check_branch
      %89 = sbr.rel (0) target = $region21
    $region20: #{tpu_custom_call.1} parent=1 // pred_region
      %s91 = ssub.s32 128, 128
      %92 = vsyncadd [#allocation4], %s91
      %s94 = sshll.u32 [#allocation7], 4
      %s95 = int_to_ptr.vmem [resolvable:$true] %s94
      %97 = dma.vmem_to_hbm [thread:$0]  %s95, 128, %s2, [#allocation4]
    $region21: #{tpu_custom_call.1} parent=1 // pred_fallthru
      _
    // Predicated region
    $region22: #{tpu_custom_call.1} parent=1 // pred_check
      _
    $region23: #{tpu_custom_call.1} parent=1 // pred_check_branch
      %99 = sbr.rel (0) target = $region25
    $region24: #{tpu_custom_call.1} parent=1 // pred_region
      %100 = dma.done [#allocation4], 128
    $region25: #{tpu_custom_call.1} parent=1 // pred_fallthru
      _
    %101 = vsyncpa [#allocation3], 1
    %102 = vsyncpa [#allocation6], 1
    %103 = vsyncpa [#allocation4], 1

</llo_original>
